<compile_context>
chip_gen: v6e
topology: v6e:2x2x1
jax: 0.10.0
libtpu: 0.0.40
codegen_flags: <defaults>
</compile_context>

<pallas_src>
import jax
import jax.numpy as jnp
from jax import lax
from jax.experimental import pallas as pl
from jax.experimental.pallas import tpu as pltpu

NEG_SLOPE = 0.01  # nn.LeakyReLU() default negative_slope
LANE = 128


def _leaky_relu(x):
    return jnp.where(x > 0, x, NEG_SLOPE * x)


def discriminator_kernel(y_ref, w1_ref, b1_ref, w2_ref, b2_ref, w3_ref, b3_ref,
                         o_ref):
    # y tile arrives untransposed (tb, ydim) straight from HBM; the transpose to
    # batch-on-lanes happens inside the MXU via the trans_b contraction below.
    y_b = y_ref[...].astype(jnp.bfloat16)

    # Layer 1: w1 (hdim, ydim) contracted with y (tb, ydim) over the feature dim
    # -> (hdim, tb); f32 MXU accumulate, f32 bias-add / LeakyReLU on the VPU.
    h = lax.dot_general(w1_ref[...], y_b,
                        dimension_numbers=(((1,), (1,)), ((), ())),
                        preferred_element_type=jnp.float32) + b1_ref[...]
    h = _leaky_relu(h)

    # Hidden layer: (hdim, hdim) @ (hdim, tb) -> (hdim, tb).
    h = jnp.dot(w2_ref[...], h.astype(jnp.bfloat16),
                preferred_element_type=jnp.float32) + b2_ref[...]
    h = _leaky_relu(h)

    # Output layer: (1, hdim) @ (hdim, tb) -> lane-dense (1, tb) slab.
    # (A VPU-mul + sublane reduce is possible for M=1 but this is never the
    # bottleneck at these shapes.)
    logits = jnp.dot(w3_ref[...], h.astype(jnp.bfloat16),
                     preferred_element_type=jnp.float32) + b3_ref[...]

    # Numerically stable sigmoid: exp(-|x|) <= 1, no overflow, exact division.
    z = jnp.exp(-jnp.abs(logits))
    inv = 1.0 / (1.0 + z)
    o_ref[...] = jnp.where(logits >= 0.0, inv, z * inv)


def _pick_batch_tile(batch, hdim):
    """Batch tile (lane axis): large enough to amortize ~0.35us/grid-step,
    small enough that the (hdim, tb) f32 intermediates stay a few MiB,
    >= 2 near-balanced tiles when B > 128 (feeds both v7x TensorCores and keeps
    edge-block padding waste low)."""
    if batch <= LANE:
        return LANE
    cap = (4 << 20) // max(4 * hdim, 1)              # hdim*tb*4 <= ~4 MiB
    cap = max(LANE, min(4096, (cap // LANE) * LANE))
    n_tiles = max(2, -(-batch // cap))
    per_tile = -(-batch // n_tiles)
    tb = -(-per_tile // LANE) * LANE
    return max(LANE, min(tb, cap))


def _vmem_limit_bytes(ydim, hdim, tb):
    weights = 2 * (hdim * ydim + hdim * hdim + hdim)   # bf16, single-buffered
    biases = 4 * (2 * hdim + 1)                        # f32
    y_tiles = 2 * (tb * ydim * 4)                      # double-buffered f32 y tile
    out_tiles = 2 * (tb * 4)                           # double-buffered output tile
    activations = 3 * (hdim * tb * 4)                  # f32 intermediates headroom
    need = weights + biases + y_tiles + out_tiles + activations
    # Explicit limit: v5e scoped default is 16 MiB; stay inside v7x's 64 MiB.
    return int(min(max(2 * need, 8 << 20), 48 << 20))


def prepare_params(params):
    """One-time prep (outside the per-call wrapper): bf16 MXU weights — PyTorch
    (out, in) layout is already what W @ x^T needs — and column-vector f32 biases."""
    hdim = params["w1"].shape[0]
    return {
        "w1": params["w1"].astype(jnp.bfloat16),   # (hdim, ydim)
        "w2": params["w2"].astype(jnp.bfloat16),   # (hdim, hdim)
        "w3": params["w3"].astype(jnp.bfloat16),   # (1, hdim)
        "b1": params["b1"].reshape(hdim, 1).astype(jnp.float32),
        "b2": params["b2"].reshape(hdim, 1).astype(jnp.float32),
        "b3": params["b3"].reshape(1, 1).astype(jnp.float32),
    }


def discriminator_forward(y, prepped):
    """y: (B, ydim) float32.  prepped: output of prepare_params."""
    batch, ydim = y.shape
    hdim = prepped["w1"].shape[0]

    tb = _pick_batch_tile(batch, hdim)
    n_tiles = -(-batch // tb)

    def resident(shape):
        # Constant block index -> stays VMEM-resident across the whole grid;
        # Buffered(1) because re-buffering a never-changing block is pure waste.
        return pl.BlockSpec(shape, lambda i: (0, 0),
                            pipeline_mode=pl.Buffered(1))

    out = pl.pallas_call(
        discriminator_kernel,
        out_shape=jax.ShapeDtypeStruct((1, batch), jnp.float32),
        grid=(n_tiles,),
        in_specs=[
            pl.BlockSpec((tb, ydim), lambda i: (i, 0)),  # y tile, untransposed
            resident((hdim, ydim)),    # w1
            resident((hdim, 1)),       # b1
            resident((hdim, hdim)),    # w2
            resident((hdim, 1)),       # b2
            resident((1, hdim)),       # w3
            resident((1, 1)),          # b3
        ],
        out_specs=pl.BlockSpec((1, tb), lambda i: (0, i)),  # lane-dense output
        compiler_params=pltpu.CompilerParams(
            dimension_semantics=("parallel",),
            vmem_limit_bytes=_vmem_limit_bytes(ydim, hdim, tb)),
    )(y, prepped["w1"], prepped["b1"], prepped["w2"], prepped["b2"],
      prepped["w3"], prepped["b3"])

    # Note: for hdim large enough that hdim^2 bf16 no longer fits resident in
    # v7x's 64 MiB VMEM, add a K-tiling grid axis with an f32 VMEM accumulator.
    return out.reshape(batch, 1)   # back to the PyTorch-facing (B, 1) shape


def init_params(key, ydim, hdim):
    """Deterministic synthetic init, PyTorch layout: weight (out, in), bias (out,)."""
    ks = jax.random.split(key, 6)

    def uniform(k, shape, fan_in):
        bound = 1.0 / jnp.sqrt(float(fan_in))
        return jax.random.uniform(k, shape, jnp.float32, -bound, bound)

    return {
        "w1": uniform(ks[0], (hdim, ydim), ydim),
        "b1": uniform(ks[1], (hdim,), ydim),
        "w2": uniform(ks[2], (hdim, hdim), hdim),
        "b2": uniform(ks[3], (hdim,), hdim),
        "w3": uniform(ks[4], (1, hdim), hdim),
        "b3": uniform(ks[5], (1,), hdim),
    }


def reference_forward(y, p):
    """Pure-JAX f32 reference matching the PyTorch module semantics."""
    h = _leaky_relu(y @ p["w1"].T + p["b1"])
    h = _leaky_relu(h @ p["w2"].T + p["b2"])
    return jax.nn.sigmoid(h @ p["w3"].T + p["b3"])


if __name__ == "__main__":
    B, ydim, hdim = 8, 8, 32  # small shapes consistent with Discriminator(ydim, hdim)
    key = jax.random.PRNGKey(0)
    k_y, k_p = jax.random.split(key)

    y = jax.random.normal(k_y, (B, ydim), jnp.float32)
    params = init_params(k_p, ydim, hdim)

    prepped = prepare_params(params)                 # one-time weight prep
    forward = jax.jit(discriminator_forward)

    out = jax.block_until_ready(forward(y, prepped))
    ref = reference_forward(y, params)

    assert out.shape == (B, 1)
    max_err = float(jnp.max(jnp.abs(out - ref)))
    # bf16 matmul inputs vs the f32 reference: loosened tolerance.
    assert max_err < 2e-2, f"mismatch vs JAX reference: max abs err {max_err}"

    print("KERNEL_OK")
</pallas_src>

<mosaic_0001>
module attributes {stable_mosaic.version = 11 : i64} {
  func.func @discriminator_kernel(%arg0: i32, %arg1: memref<128x8xf32, #tpu.memory_space<vmem>>, %arg2: memref<32x8xbf16, #tpu.memory_space<vmem>>, %arg3: memref<32x1xf32, #tpu.memory_space<vmem>>, %arg4: memref<32x32xbf16, #tpu.memory_space<vmem>>, %arg5: memref<32x1xf32, #tpu.memory_space<vmem>>, %arg6: memref<1x32xbf16, #tpu.memory_space<vmem>>, %arg7: memref<1x1xf32, #tpu.memory_space<vmem>>, %arg8: memref<1x128xf32, #tpu.memory_space<vmem>>) attributes {dimension_semantics = [#tpu.dimension_semantics<parallel>], iteration_bounds = array<i64: 1>, scalar_prefetch = 0 : i64, scratch_operands = 0 : i64, tpu.core_type = #tpu.core_type<tc>, window_params = [{transform_indices = @transform_0, window_bounds = array<i64: 128, 8>}, {pipeline_mode = #tpu.pipeline_mode<synchronous>, transform_indices = @transform_1, window_bounds = array<i64: 32, 8>}, {pipeline_mode = #tpu.pipeline_mode<synchronous>, transform_indices = @transform_2, window_bounds = array<i64: 32, 1>}, {pipeline_mode = #tpu.pipeline_mode<synchronous>, transform_indices = @transform_3, window_bounds = array<i64: 32, 32>}, {pipeline_mode = #tpu.pipeline_mode<synchronous>, transform_indices = @transform_4, window_bounds = array<i64: 32, 1>}, {pipeline_mode = #tpu.pipeline_mode<synchronous>, transform_indices = @transform_5, window_bounds = array<i64: 1, 32>}, {pipeline_mode = #tpu.pipeline_mode<synchronous>, transform_indices = @transform_6, window_bounds = array<i64: 1, 1>}, {transform_indices = @transform_7, window_bounds = array<i64: 1, 128>}]} {
    %c0 = arith.constant 0 : index
    %c0_0 = arith.constant 0 : index
    %0 = vector.load %arg1[%c0, %c0_0] : memref<128x8xf32, #tpu.memory_space<vmem>>, vector<128x8xf32>
    %1 = arith.truncf %0 : vector<128x8xf32> to vector<128x8xbf16>
    %c0_1 = arith.constant 0 : index
    %c0_2 = arith.constant 0 : index
    %2 = vector.load %arg2[%c0_1, %c0_2] : memref<32x8xbf16, #tpu.memory_space<vmem>>, vector<32x8xbf16>
    %cst = arith.constant dense<0.000000e+00> : vector<32x128xf32>
    %3 = tpu.matmul %2, %1, %cst {dimension_numbers = #tpu.dot_dimension_numbers<[1], [1], [0], [0], [0, 0, 1, 0], [], []>} : vector<32x8xbf16>, vector<128x8xbf16>, vector<32x128xf32> -> vector<32x128xf32>
    %c0_3 = arith.constant 0 : index
    %c0_4 = arith.constant 0 : index
    %4 = vector.load %arg3[%c0_3, %c0_4] : memref<32x1xf32, #tpu.memory_space<vmem>>, vector<32x1xf32>
    %5 = vector.broadcast %4 : vector<32x1xf32> to vector<32x128xf32>
    %6 = arith.addf %3, %5 : vector<32x128xf32>
    %cst_5 = arith.constant 0.000000e+00 : f32
    %7 = vector.broadcast %cst_5 : f32 to vector<32x128xf32>
    %8 = arith.cmpf ogt, %6, %7 : vector<32x128xf32>
    %cst_6 = arith.constant 0.00999999977 : f32
    %9 = vector.broadcast %cst_6 : f32 to vector<32x128xf32>
    %10 = arith.mulf %9, %6 : vector<32x128xf32>
    %11 = arith.select %8, %6, %10 : vector<32x128xi1>, vector<32x128xf32>
    %c0_7 = arith.constant 0 : index
    %c0_8 = arith.constant 0 : index
    %12 = vector.load %arg4[%c0_7, %c0_8] : memref<32x32xbf16, #tpu.memory_space<vmem>>, vector<32x32xbf16>
    %13 = arith.truncf %11 : vector<32x128xf32> to vector<32x128xbf16>
    %cst_9 = arith.constant dense<0.000000e+00> : vector<32x128xf32>
    %14 = tpu.matmul %12, %13, %cst_9 {dimension_numbers = #tpu.dot_dimension_numbers<[1], [0], [0], [1], [0, 0, 1, 1], [], []>} : vector<32x32xbf16>, vector<32x128xbf16>, vector<32x128xf32> -> vector<32x128xf32>
    %c0_10 = arith.constant 0 : index
    %c0_11 = arith.constant 0 : index
    %15 = vector.load %arg5[%c0_10, %c0_11] : memref<32x1xf32, #tpu.memory_space<vmem>>, vector<32x1xf32>
    %16 = vector.broadcast %15 : vector<32x1xf32> to vector<32x128xf32>
    %17 = arith.addf %14, %16 : vector<32x128xf32>
    %cst_12 = arith.constant 0.000000e+00 : f32
    %18 = vector.broadcast %cst_12 : f32 to vector<32x128xf32>
    %19 = arith.cmpf ogt, %17, %18 : vector<32x128xf32>
    %cst_13 = arith.constant 0.00999999977 : f32
    %20 = vector.broadcast %cst_13 : f32 to vector<32x128xf32>
    %21 = arith.mulf %20, %17 : vector<32x128xf32>
    %22 = arith.select %19, %17, %21 : vector<32x128xi1>, vector<32x128xf32>
    %c0_14 = arith.constant 0 : index
    %c0_15 = arith.constant 0 : index
    %23 = vector.load %arg6[%c0_14, %c0_15] : memref<1x32xbf16, #tpu.memory_space<vmem>>, vector<1x32xbf16>
    %24 = arith.truncf %22 : vector<32x128xf32> to vector<32x128xbf16>
    %cst_16 = arith.constant dense<0.000000e+00> : vector<1x128xf32>
    %25 = tpu.matmul %23, %24, %cst_16 {dimension_numbers = #tpu.dot_dimension_numbers<[1], [0], [0], [1], [0, 0, 1, 1], [], []>} : vector<1x32xbf16>, vector<32x128xbf16>, vector<1x128xf32> -> vector<1x128xf32>
    %c0_17 = arith.constant 0 : index
    %c0_18 = arith.constant 0 : index
    %26 = vector.load %arg7[%c0_17, %c0_18] : memref<1x1xf32, #tpu.memory_space<vmem>>, vector<1x1xf32>
    %27 = vector.broadcast %26 : vector<1x1xf32> to vector<1x128xf32>
    %28 = arith.addf %25, %27 : vector<1x128xf32>
    %29 = math.absf %28 : vector<1x128xf32>
    %cst_19 = arith.constant 0.000000e+00 : f32
    %30 = vector.broadcast %cst_19 : f32 to vector<1x128xf32>
    %31 = arith.subf %30, %29 : vector<1x128xf32>
    %32 = math.exp %31 : vector<1x128xf32>
    %cst_20 = arith.constant 1.000000e+00 : f32
    %33 = vector.broadcast %cst_20 : f32 to vector<1x128xf32>
    %34 = arith.addf %33, %32 : vector<1x128xf32>
    %cst_21 = arith.constant 1.000000e+00 : f32
    %35 = vector.broadcast %cst_21 : f32 to vector<1x128xf32>
    %36 = arith.divf %35, %34 : vector<1x128xf32>
    %cst_22 = arith.constant 0.000000e+00 : f32
    %37 = vector.broadcast %cst_22 : f32 to vector<1x128xf32>
    %38 = arith.cmpf oge, %28, %37 : vector<1x128xf32>
    %39 = arith.mulf %32, %36 : vector<1x128xf32>
    %40 = arith.select %38, %36, %39 : vector<1x128xi1>, vector<1x128xf32>
    %c0_23 = arith.constant 0 : index
    %c0_24 = arith.constant 0 : index
    %41 = vector.load %arg8[%c0_23, %c0_24] : memref<1x128xf32, #tpu.memory_space<vmem>>, vector<1x128xf32>
    tpu.vector_store %arg8[%c0_23, %c0_24], %40 {strides = array<i32>} : memref<1x128xf32, #tpu.memory_space<vmem>>, vector<1x128xf32>,
    return
  }
  func.func @transform_0(%arg0: i32) -> (i32, i32) {
    %c0_i32 = arith.constant 0 : i32
    %c0_i32_0 = arith.constant 0 : i32
    return %arg0, %c0_i32 : i32, i32
  }
  func.func @transform_1(%arg0: i32) -> (i32, i32) {
    %c0_i32 = arith.constant 0 : i32
    %c0_i32_0 = arith.constant 0 : i32
    %c0_i32_1 = arith.constant 0 : i32
    return %c0_i32, %c0_i32_0 : i32, i32
  }
  func.func @transform_2(%arg0: i32) -> (i32, i32) {
    %c0_i32 = arith.constant 0 : i32
    %c0_i32_0 = arith.constant 0 : i32
    %c0_i32_1 = arith.constant 0 : i32
    return %c0_i32, %c0_i32_0 : i32, i32
  }
  func.func @transform_3(%arg0: i32) -> (i32, i32) {
    %c0_i32 = arith.constant 0 : i32
    %c0_i32_0 = arith.constant 0 : i32
    %c0_i32_1 = arith.constant 0 : i32
    return %c0_i32, %c0_i32_0 : i32, i32
  }
  func.func @transform_4(%arg0: i32) -> (i32, i32) {
    %c0_i32 = arith.constant 0 : i32
    %c0_i32_0 = arith.constant 0 : i32
    %c0_i32_1 = arith.constant 0 : i32
    return %c0_i32, %c0_i32_0 : i32, i32
  }
  func.func @transform_5(%arg0: i32) -> (i32, i32) {
    %c0_i32 = arith.constant 0 : i32
    %c0_i32_0 = arith.constant 0 : i32
    %c0_i32_1 = arith.constant 0 : i32
    return %c0_i32, %c0_i32_0 : i32, i32
  }
  func.func @transform_6(%arg0: i32) -> (i32, i32) {
    %c0_i32 = arith.constant 0 : i32
    %c0_i32_0 = arith.constant 0 : i32
    %c0_i32_1 = arith.constant 0 : i32
    return %c0_i32, %c0_i32_0 : i32, i32
  }
  func.func @transform_7(%arg0: i32) -> (i32, i32) {
    %c0_i32 = arith.constant 0 : i32
    %c0_i32_0 = arith.constant 0 : i32
    return %c0_i32, %arg0 : i32, i32
  }
}

</mosaic_0001>

<llo_original>
// kernel: discriminator_forward.1
$region0: #{discriminator_forward.1}
  #allocation0 [shape = 'u32[]', space=smem, size = 0x4, offset = 0x4, fixed_abs, tag = 'smem constant byte address 0x4 - core index']
  #allocation1 [shape = 'u32[144,128]{1,0:T(1,128)}', space=vmem, size = 0x12000, scoped, tag = 'internal scratch']
  #allocation2 [shape = 'f32[1,1]{1,0:T(1,128)S(1)}', space=vmem, size = 0x200, scoped, tag = 'scoped memory for discriminator_forward.1']
  %s0 = inlined_call_operand.vmem [shape: f32[8,8], index: 0, kind: input, shape index: {}]
  %s1 = inlined_call_operand.vmem [shape: bf16[32,8], index: 1, kind: input, shape index: {}]
  %s2 = inlined_call_operand.vmem [shape: f32[32,1], index: 2, kind: input, shape index: {}]
  %s3 = inlined_call_operand.vmem [shape: bf16[32,32], index: 3, kind: input, shape index: {}]
  %s4 = inlined_call_operand.vmem [shape: f32[32,1], index: 4, kind: input, shape index: {}]
  %s5 = inlined_call_operand.vmem [shape: bf16[1,32], index: 5, kind: input, shape index: {}]
  %s6 = inlined_call_operand.<no memory space> [shape: f32[1,1], index: 6, kind: input, shape index: {}]
  %s7 = inlined_call_operand.hbm [shape: f32[1,8], index: 7, kind: output, shape index: {}]
  %s8 = sld [smem:[#allocation0]]
  $region38: #{discriminator_forward.1} parent=0
    _
  %s10 = ssub.s32 1, %s8
  %s11 = scalar_select 0, %s10, %s8
  %v12 = vstv %s6
  %13 = vst [vmem:[#allocation2] sm:$0x1] %v12
  $region1: #{discriminator_forward.1} parent=0
    #allocation3 [shape = 'u8[512]{0}', space=vmem, size = 0x400, scoped, tag = 'output window, operand 0, single buffered']
    #allocation4 [shape = 's32[1]{0}', space=sflag, size = 0x4, scoped, tag = 'scoped memory for discriminator_forward.1']
    %14 = vsyncpa [#allocation4], 0
    // Predicated region
    $region2: #{discriminator_forward.1} parent=1 // pred_check
      _
    $region3: #{discriminator_forward.1} parent=1 // pred_check_branch
      %16 = sbr.rel (0) target = $region5
    $region4: #{discriminator_forward.1} parent=1 // pred_region
      _
    $region5: #{discriminator_forward.1} parent=1 // pred_fallthru
      _
    // Predicated region
    $region6: #{discriminator_forward.1} parent=1 // pred_check
      _
    $region7: #{discriminator_forward.1} parent=1 // pred_check_branch
      %18 = sbr.rel (0) target = $region9
    $region8: #{discriminator_forward.1} parent=1 // pred_region
      _
    $region9: #{discriminator_forward.1} parent=1 // pred_fallthru
      _
    // Predicated region
    $region10: #{discriminator_forward.1} parent=1 // pred_check
      _
    $region11: #{discriminator_forward.1} parent=1 // pred_check_branch
      %20 = sbr.rel (0) target = $region13
    $region12: #{discriminator_forward.1} parent=1 // pred_region
      _
    $region13: #{discriminator_forward.1} parent=1 // pred_fallthru
      _
    // Predicated region
    $region14: #{discriminator_forward.1} parent=1 // pred_check
      _
    $region15: #{discriminator_forward.1} parent=1 // pred_check_branch
      %22 = sbr.rel (0) target = $region17
    $region16: #{discriminator_forward.1} parent=1 // pred_region
      _
    $region17: #{discriminator_forward.1} parent=1 // pred_fallthru
      _
    // Predicated region
    $region18: #{discriminator_forward.1} parent=1 // pred_check
      _
    $region19: #{discriminator_forward.1} parent=1 // pred_check_branch
      %24 = sbr.rel (0) target = $region21
    $region20: #{discriminator_forward.1} parent=1 // pred_region
      _
    $region21: #{discriminator_forward.1} parent=1 // pred_fallthru
      _
    // Predicated region
    $region22: #{discriminator_forward.1} parent=1 // pred_check
      _
    $region23: #{discriminator_forward.1} parent=1 // pred_check_branch
      %26 = sbr.rel (0) target = $region25
    $region24: #{discriminator_forward.1} parent=1 // pred_region
      _
    $region25: #{discriminator_forward.1} parent=1 // pred_fallthru
      _
    // Predicated region
    $region26: #{discriminator_forward.1} parent=1 // pred_check
      _
    $region27: #{discriminator_forward.1} parent=1 // pred_check_branch
      %28 = sbr.rel (0) target = $region29
    $region28: #{discriminator_forward.1} parent=1 // pred_region
      _
    $region29: #{discriminator_forward.1} parent=1 // pred_fallthru
      _
    %v30 = vld [vmem:[%s0] sm:$0xff]
    %v31 = vld [vmem:[%s0 + $0x8] sm:$0xff]
    %v32 = vld [vmem:[%s0 + $0x10] sm:$0xff]
    %v33 = vld [vmem:[%s0 + $0x18] sm:$0xff]
    %v34 = vld [vmem:[%s0 + $0x20] sm:$0xff]
    %v35 = vld [vmem:[%s0 + $0x28] sm:$0xff]
    %v36 = vld [vmem:[%s0 + $0x30] sm:$0xff]
    %v37 = vld [vmem:[%s0 + $0x38] sm:$0xff]
    %v38 = vld [vmem:[%s0 + $0x40] sm:$0xff]
    %v39 = vld [vmem:[%s0 + $0x48] sm:$0xff]
    %v40 = vld [vmem:[%s0 + $0x50] sm:$0xff]
    %v41 = vld [vmem:[%s0 + $0x58] sm:$0xff]
    %v42 = vld [vmem:[%s0 + $0x60] sm:$0xff]
    %v43 = vld [vmem:[%s0 + $0x68] sm:$0xff]
    %v44 = vld [vmem:[%s0 + $0x70] sm:$0xff]
    %v45 = vld [vmem:[%s0 + $0x78] sm:$0xff]
    %v46 = vpack.c.bf16 %v31, %v30
    %v47 = vpack.c.bf16 %v33, %v32
    %v48 = vpack.c.bf16 %v35, %v34
    %v49 = vpack.c.bf16 %v37, %v36
    %v50 = vpack.c.bf16 %v39, %v38
    %v51 = vpack.c.bf16 %v41, %v40
    %v52 = vpack.c.bf16 %v43, %v42
    %v53 = vpack.c.bf16 %v45, %v44
    %v54 = vld [vmem:[%s1] sm:$0xf]
    %v55 = vld [vmem:[%s1 + $0x4] sm:$0xf]
    %v56 = vld [vmem:[%s1 + $0x8] sm:$0xf]
    %v57 = vld [vmem:[%s1 + $0xc] sm:$0xf]
    %v58 = vld [vmem:[%s2] sm:$0xff]
    %v59 = vld [vmem:[%s2 + $0x8] sm:$0xff]
    %v60 = vld [vmem:[%s2 + $0x10] sm:$0xff]
    %v61 = vld [vmem:[%s2 + $0x18] sm:$0xff]
    %63 = vset.pattern.permute.xlu0 0
    %64 = vperm.xlu0 %63, %v58
    %v65 = vpop.permute.xlu0 %64
    %68 = vset.pattern.permute.xlu0 0
    %69 = vperm.xlu0 %68, %v59
    %v70 = vpop.permute.xlu0 %69
    %73 = vset.pattern.permute.xlu0 0
    %74 = vperm.xlu0 %73, %v60
    %v75 = vpop.permute.xlu0 %74
    %78 = vset.pattern.permute.xlu0 0
    %79 = vperm.xlu0 %78, %v61
    %v80 = vpop.permute.xlu0 %79
    %v86 = vunpack.c.l.b16 %v54
    %v87 = vunpack.c.l.b16 %v55
    %v88 = vunpack.c.l.b16 %v56
    %v89 = vunpack.c.l.b16 %v57
    %v90 = vpack.c.b16 %v87, %v86
    %v91 = vpack.c.b16 %v89, %v88
    %vm92 = vcmask 64512
    %v94 = vsel %vm92, %v90, 0
    %v97 = vsel %vm92, %v91, 0
    %v100 = vsel %vm92, %v46, 0
    %v103 = vsel %vm92, %v47, 0
    %v106 = vsel %vm92, %v48, 0
    %v109 = vsel %vm92, %v49, 0
    %v112 = vsel %vm92, %v50, 0
    %v115 = vsel %vm92, %v51, 0
    %v118 = vsel %vm92, %v52, 0
    %v121 = vsel %vm92, %v53, 0
    %123 = vmatprep.subr.bf16.mxu0 0
    %124 = vmatpush1.bf16.xpose.msra.mxu0 %v121
    %125 = vmatprep.subr.bf16.mxu0 0
    %126 = vmatpush1.bf16.xpose.msra.mxu0 %v118
    %127 = vmatprep.subr.bf16.mxu0 0
    %128 = vmatpush1.bf16.xpose.msra.mxu0 %v115
    %129 = vmatprep.subr.bf16.mxu0 0
    %130 = vmatpush1.bf16.xpose.msra.mxu0 %v112
    %131 = vmatprep.subr.bf16.mxu0 0
    %132 = vmatpush1.bf16.xpose.msra.mxu0 %v109
    %133 = vmatprep.subr.bf16.mxu0 0
    %134 = vmatpush1.bf16.xpose.msra.mxu0 %v106
    %135 = vmatprep.subr.bf16.mxu0 0
    %136 = vmatpush1.bf16.xpose.msra.mxu0 %v103
    %137 = vmatprep.subr.bf16.mxu0 0
    %138 = vmatpush1.bf16.xpose.msra.mxu0 %v100
    %139 = vmatprep.subr.bf16.mxu0 0
    %140 = vmatpush2.bf16.xpose.msra.mxu0 0
    %141 = vmatprep.subr.bf16.mxu0 0
    %142 = vmatpush2.bf16.xpose.msra.mxu0 0
    %143 = vmatprep.subr.bf16.mxu0 0
    %144 = vmatpush2.bf16.xpose.msra.mxu0 0
    %145 = vmatprep.subr.bf16.mxu0 0
    %146 = vmatpush2.bf16.xpose.msra.mxu0 0
    %147 = vmatprep.subr.bf16.mxu0 0
    %148 = vmatpush2.bf16.xpose.msra.mxu0 0
    %149 = vmatprep.subr.bf16.mxu0 0
    %150 = vmatpush2.bf16.xpose.msra.mxu0 0
    %151 = vmatprep.subr.bf16.mxu0 0
    %152 = vmatpush2.bf16.xpose.msra.mxu0 0
    %153 = vmatprep.subr.bf16.mxu0 0
    %154 = vmatpush2.bf16.xpose.msra.mxu0 0
    %155 = vmatprep.mubr.bf16.mxu0 0
    %156 = vmatmul.mubr.bf16.gmra.mxu0 %v94
    %v157 = vpop.f32.mrf.mxu0
    %v158 = vadd.f32 %v65, %v157
    %v159 = vpop.f32.mrf.mxu0
    %v160 = vpop.f32.mrf.mxu0
    %v161 = vadd.f32 %v70, %v160
    %v162 = vpop.f32.mrf.mxu0
    %163 = vmatprep.mubr.bf16.mxu0 0
    %164 = vmatmul.mubr.bf16.gmra.mxu0 %v97
    %v165 = vpop.f32.mrf.mxu0
    %v166 = vadd.f32 %v75, %v165
    %v167 = vpop.f32.mrf.mxu0
    %v168 = vpop.f32.mrf.mxu0
    %v169 = vadd.f32 %v80, %v168
    %v170 = vpop.f32.mrf.mxu0
    %171 = vdwg.mxu0
    %vm172 = vcmp.gt.f32.partialorder %v158, 0.0
    %vm173 = vcmp.gt.f32.partialorder %v161, 0.0
    %vm174 = vcmp.gt.f32.partialorder %v166, 0.0
    %vm175 = vcmp.gt.f32.partialorder %v169, 0.0
    %v176 = vmul.f32 %v158, 0.01
    %v177 = vmul.f32 %v161, 0.01
    %v178 = vmul.f32 %v166, 0.01
    %v179 = vmul.f32 %v169, 0.01
    %v180 = vsel %vm172, %v158, %v176
    %v181 = vsel %vm173, %v161, %v177
    %v182 = vsel %vm174, %v166, %v178
    %v183 = vsel %vm175, %v169, %v179
    %v184 = vld [vmem:[%s3] sm:$0xf]
    %v185 = vld [vmem:[%s3 + $0x4] sm:$0xf]
    %v186 = vld [vmem:[%s3 + $0x8] sm:$0xf]
    %v187 = vld [vmem:[%s3 + $0xc] sm:$0xf]
    %v188 = vpack.c.bf16 %v181, %v180
    %v189 = vpack.c.bf16 %v183, %v182
    %v190 = vld [vmem:[%s4] sm:$0xff]
    %v191 = vld [vmem:[%s4 + $0x8] sm:$0xff]
    %v192 = vld [vmem:[%s4 + $0x10] sm:$0xff]
    %v193 = vld [vmem:[%s4 + $0x18] sm:$0xff]
    %195 = vset.pattern.permute.xlu0 0
    %196 = vperm.xlu0 %195, %v190
    %v197 = vpop.permute.xlu0 %196
    %200 = vset.pattern.permute.xlu0 0
    %201 = vperm.xlu0 %200, %v191
    %v202 = vpop.permute.xlu0 %201
    %205 = vset.pattern.permute.xlu0 0
    %206 = vperm.xlu0 %205, %v192
    %v207 = vpop.permute.xlu0 %206
    %210 = vset.pattern.permute.xlu0 0
    %211 = vperm.xlu0 %210, %v193
    %v212 = vpop.permute.xlu0 %211
    %v218 = vunpack.c.l.b16 %v184
    %v219 = vunpack.c.l.b16 %v185
    %v220 = vunpack.c.l.b16 %v186
    %v221 = vunpack.c.l.b16 %v187
    %v222 = vpack.c.b16 %v219, %v218
    %v223 = vpack.c.b16 %v221, %v220
    %vm224 = vcmask 261120
    %v226 = vsel %vm224, %v222, 0
    %v229 = vsel %vm224, %v223, 0
    %231 = vmatprep.subr.bf16.mxu0 0
    %232 = vmatpush1.bf16.msra.mxu0 0
    %233 = vmatprep.subr.bf16.mxu0 0
    %234 = vmatpush1.bf16.msra.mxu0 0
    %235 = vmatprep.subr.bf16.mxu0 0
    %236 = vmatpush1.bf16.msra.mxu0 0
    %237 = vmatprep.subr.bf16.mxu0 0
    %238 = vmatpush1.bf16.msra.mxu0 0
    %239 = vmatprep.subr.bf16.mxu0 0
    %240 = vmatpush1.bf16.msra.mxu0 0
    %241 = vmatprep.subr.bf16.mxu0 0
    %242 = vmatpush1.bf16.msra.mxu0 0
    %243 = vmatprep.subr.bf16.mxu0 0
    %244 = vmatpush1.bf16.msra.mxu0 %v189
    %245 = vmatprep.subr.bf16.mxu0 0
    %246 = vmatpush1.bf16.msra.mxu0 %v188
    %247 = vmatprep.subr.bf16.mxu0 0
    %248 = vmatpush2.bf16.msra.mxu0 0
    %249 = vmatprep.subr.bf16.mxu0 0
    %250 = vmatpush2.bf16.msra.mxu0 0
    %251 = vmatprep.subr.bf16.mxu0 0
    %252 = vmatpush2.bf16.msra.mxu0 0
    %253 = vmatprep.subr.bf16.mxu0 0
    %254 = vmatpush2.bf16.msra.mxu0 0
    %255 = vmatprep.subr.bf16.mxu0 0
    %256 = vmatpush2.bf16.msra.mxu0 0
    %257 = vmatprep.subr.bf16.mxu0 0
    %258 = vmatpush2.bf16.msra.mxu0 0
    %259 = vmatprep.subr.bf16.mxu0 0
    %260 = vmatpush2.bf16.msra.mxu0 0
    %261 = vmatprep.subr.bf16.mxu0 0
    %262 = vmatpush2.bf16.msra.mxu0 0
    %263 = vmatprep.mubr.bf16.mxu0 0
    %264 = vmatmul.mubr.bf16.gmra.mxu0 %v226
    %v265 = vpop.f32.mrf.mxu0
    %v266 = vadd.f32 %v197, %v265
    %v267 = vpop.f32.mrf.mxu0
    %v268 = vpop.f32.mrf.mxu0
    %v269 = vadd.f32 %v202, %v268
    %v270 = vpop.f32.mrf.mxu0
    %271 = vmatprep.mubr.bf16.mxu0 0
    %272 = vmatmul.mubr.bf16.gmra.mxu0 %v229
    %v273 = vpop.f32.mrf.mxu0
    %v274 = vadd.f32 %v207, %v273
    %v275 = vpop.f32.mrf.mxu0
    %v276 = vpop.f32.mrf.mxu0
    %v277 = vadd.f32 %v212, %v276
    %v278 = vpop.f32.mrf.mxu0
    %279 = vdwg.mxu0
    %vm280 = vcmp.gt.f32.partialorder %v266, 0.0
    %vm281 = vcmp.gt.f32.partialorder %v269, 0.0
    %vm282 = vcmp.gt.f32.partialorder %v274, 0.0
    %vm283 = vcmp.gt.f32.partialorder %v277, 0.0
    %v284 = vmul.f32 %v266, 0.01
    %v285 = vmul.f32 %v269, 0.01
    %v286 = vmul.f32 %v274, 0.01
    %v287 = vmul.f32 %v277, 0.01
    %v288 = vsel %vm280, %v266, %v284
    %v289 = vsel %vm281, %v269, %v285
    %v290 = vsel %vm282, %v274, %v286
    %v291 = vsel %vm283, %v277, %v287
    %v292 = vld [vmem:[%s5] sm:$0x1]
    %v293 = vpack.c.bf16 %v289, %v288
    %v294 = vpack.c.bf16 %v291, %v290
    %v295 = vld [vmem:[#allocation2] sm:$0x1]
    %297 = vset.pattern.permute.xlu0 0
    %298 = vperm.xlu0 %297, %v295
    %v299 = vpop.permute.xlu0 %298
    %v301 = vlaneseq
    %v302 = vshrl.u32 %v301, 7
    %v303 = vsub.s32 0, %v302
    %v304 = vrot.slane %v299, %v303
    %v306 = vsel %vm224, %v292, 0
    %308 = vmatprep.subr.bf16.mxu0 0
    %309 = vmatpush1.bf16.msra.mxu0 0
    %310 = vmatprep.subr.bf16.mxu0 0
    %311 = vmatpush1.bf16.msra.mxu0 0
    %312 = vmatprep.subr.bf16.mxu0 0
    %313 = vmatpush1.bf16.msra.mxu0 0
    %314 = vmatprep.subr.bf16.mxu0 0
    %315 = vmatpush1.bf16.msra.mxu0 0
    %316 = vmatprep.subr.bf16.mxu0 0
    %317 = vmatpush1.bf16.msra.mxu0 0
    %318 = vmatprep.subr.bf16.mxu0 0
    %319 = vmatpush1.bf16.msra.mxu0 0
    %320 = vmatprep.subr.bf16.mxu0 0
    %321 = vmatpush1.bf16.msra.mxu0 %v294
    %322 = vmatprep.subr.bf16.mxu0 0
    %323 = vmatpush1.bf16.msra.mxu0 %v293
    %324 = vmatprep.subr.bf16.mxu0 0
    %325 = vmatpush2.bf16.msra.mxu0 0
    %326 = vmatprep.subr.bf16.mxu0 0
    %327 = vmatpush2.bf16.msra.mxu0 0
    %328 = vmatprep.subr.bf16.mxu0 0
    %329 = vmatpush2.bf16.msra.mxu0 0
    %330 = vmatprep.subr.bf16.mxu0 0
    %331 = vmatpush2.bf16.msra.mxu0 0
    %332 = vmatprep.subr.bf16.mxu0 0
    %333 = vmatpush2.bf16.msra.mxu0 0
    %334 = vmatprep.subr.bf16.mxu0 0
    %335 = vmatpush2.bf16.msra.mxu0 0
    %336 = vmatprep.subr.bf16.mxu0 0
    %337 = vmatpush2.bf16.msra.mxu0 0
    %338 = vmatprep.subr.bf16.mxu0 0
    %339 = vmatpush2.bf16.msra.mxu0 0
    %340 = vmatprep.mubr.bf16.mxu0 0
    %341 = vmatmul.mubr.bf16.gmra.mxu0 %v306
    %v342 = vpop.f32.mrf.mxu0
    %v343 = vadd.f32 %v304, %v342
    %v344 = vpop.f32.mrf.mxu0
    %v345 = vpop.f32.mrf.mxu0
    %v346 = vpop.f32.mrf.mxu0
    %347 = vdwg.mxu0
    %v348 = vand.u32 2147483647, %v343
    %v349 = vsub.f32 0.0, %v348
    %v350 = vmul.f32 %v349, 1.442695
    %v351 = vpow.pop %v350
    %v352 = vadd.f32 %v351, 1.0
    %v353 = vrcp.pop %v352
    %v354 = vmul.f32 1.0, %v353
    %vm355 = vcmp.ge.f32.partialorder %v343, 0.0
    %v356 = vmul.f32 %v351, %v354
    %v357 = vsel %vm355, %v354, %v356
    %358 = vst [vmem:[#allocation3] sm:$0x1] %v357
    // Predicated region
    $region30: #{discriminator_forward.1} parent=1 // pred_check
      _
    $region31: #{discriminator_forward.1} parent=1 // pred_check_branch
      %360 = sbr.rel (0) target = $region33
    $region32: #{discriminator_forward.1} parent=1 // pred_region
      %s362 = ssub.s32 16, 16
      %363 = vsyncadd [#allocation4], %s362
      %s365 = sshll.u32 [#allocation3], 4
      %s366 = int_to_ptr.vmem [resolvable:$true] %s365
      %368 = dma.vmem_to_hbm [thread:$0]  %s366, 16, %s7, [#allocation4]
    $region33: #{discriminator_forward.1} parent=1 // pred_fallthru
      _
    // Predicated region
    $region34: #{discriminator_forward.1} parent=1 // pred_check
      _
    $region35: #{discriminator_forward.1} parent=1 // pred_check_branch
      %370 = sbr.rel (0) target = $region37
    $region36: #{discriminator_forward.1} parent=1 // pred_region
      %371 = dma.done [#allocation4], 16
    $region37: #{discriminator_forward.1} parent=1 // pred_fallthru
      _
    %372 = vsyncpa [#allocation4], 1

</llo_original>
